<compile_context>
chip_gen: v5e
topology: v5e:2x2
jax: 0.10.0
libtpu: 0.0.40
codegen_flags: <defaults>
</compile_context>

<pallas_src>
import jax
import jax.numpy as jnp
import numpy as np
from jax.experimental import pallas as pl
from jax.experimental.pallas import tpu as pltpu


def _round_up(n, m):
    return ((n + m - 1) // m) * m


# ----------------------------------------------------------------------------
# Kernel 1: VariancePredictor (duration predictor), batch-folded
# ----------------------------------------------------------------------------
def _vp_kernel(alpha_ref, x_ref, w1_ref, b1_ref, g1_ref, be1_ref,
               w2_ref, b2_ref, g2_ref, be2_ref, wl_ref, bl_ref,
               dur_ref, duri_ref):
    x = x_ref[...].astype(jnp.float32)            # (R, D), R = Bb * L
    R = x.shape[0]
    bb, L = dur_ref.shape                         # lane-dense output block

    # position of each folded row inside its utterance -> boundary masks that
    # replace the zero padding of Conv1d(padding=1) across batch boundaries
    pos = jax.lax.broadcasted_iota(jnp.int32, (R, 1), 0) % L
    is_first = pos == 0
    is_last = pos == (L - 1)

    def conv1d(h, w_stacked_ref, b):
        # taps h[l-1], h[l], h[l+1] via sublane rolls (XLU), stacked on lanes,
        # then a single matmul against the (K*Cin, Cout) stacked weight.
        prev = jnp.where(is_first, 0.0, pltpu.roll(h, shift=1, axis=0))
        nxt = jnp.where(is_last, 0.0, pltpu.roll(h, shift=R - 1, axis=0))
        stacked = jnp.concatenate([prev, h, nxt], axis=-1)     # (R, 3*Cin)
        return jnp.dot(stacked, w_stacked_ref[...],
                       preferred_element_type=jnp.float32) + b

    def layer_norm(h, g, b):                      # over last dim, eps = 1e-5
        mu = jnp.mean(h, axis=-1, keepdims=True)
        var = jnp.mean((h - mu) ** 2, axis=-1, keepdims=True)
        return (h - mu) * jax.lax.rsqrt(var + 1e-5) * g + b

    h = conv1d(x, w1_ref, b1_ref[...])
    h = jnp.maximum(layer_norm(h, g1_ref[...], be1_ref[...]), 0.0)
    h = conv1d(h, w2_ref, b2_ref[...])
    h = jnp.maximum(layer_norm(h, g2_ref[...], be2_ref[...]), 0.0)

    # Linear(F -> 1) + ReLU as a lane reduction; lane-dense (Bb, L) store.
    F = h.shape[-1]
    h3 = h.reshape(bb, L, F)                      # split at sublane-tile bound
    pred = jnp.sum(h3 * wl_ref[...], axis=-1) + bl_ref[...]    # (Bb, L)
    pred = jnp.maximum(pred, 0.0)
    dur_ref[...] = pred
    # fused inference rounding: int(pred*alpha + 0.5); trunc == floor (>= 0)
    duri_ref[...] = (pred * alpha_ref[0] + 0.5).astype(jnp.int32)


def prepare_vp_params(params):
    """One-time re-layout of the PyTorch parameters (done outside the kernel)."""
    F, D, K = params["w1"].shape                  # Conv1d weight: (Cout, Cin, K)
    # stacked-tap conv weights: row index = k*Cin + c (matches tap stacking)
    w1s = jnp.transpose(params["w1"], (2, 1, 0)).reshape(K * D, F)
    w2s = jnp.transpose(params["w2"], (2, 1, 0)).reshape(K * F, F)
    return {
        "w1s": w1s, "w2s": w2s,
        "b1": params["b1"].reshape(1, F), "g1": params["g1"].reshape(1, F),
        "be1": params["be1"].reshape(1, F),
        "b2": params["b2"].reshape(1, F), "g2": params["g2"].reshape(1, F),
        "be2": params["be2"].reshape(1, F),
        "wl": params["wl"].reshape(1, F), "bl": params["bl"].reshape(1, 1),
    }


def variance_predictor(x, prep, alpha=1.0, block_b=8):
    """x: (B, L, D) f32 -> (pred (B, L) f32, rounded durations (B, L) int32)."""
    B, L, D = x.shape
    KD, F = prep["w1s"].shape
    KF = prep["w2s"].shape[0]

    bb = min(block_b, B)                          # batch items per grid step
    while B % bb:
        bb -= 1
    R = bb * L

    x2 = x.reshape(B * L, D)                      # fold batch into MXU M dim
    alpha_arr = jnp.full((1,), alpha, jnp.float32)

    const = lambda i: (0, 0)
    dur, duri = pl.pallas_call(
        _vp_kernel,
        out_shape=(jax.ShapeDtypeStruct((B, L), jnp.float32),
                   jax.ShapeDtypeStruct((B, L), jnp.int32)),
        grid=(B // bb,),
        in_specs=[
            pl.BlockSpec(memory_space=pltpu.MemorySpace.SMEM),   # alpha scalar
            pl.BlockSpec((R, D), lambda i: (i, 0)),              # folded x
            pl.BlockSpec((KD, F), const),                        # w1 stacked
            pl.BlockSpec((1, F), const), pl.BlockSpec((1, F), const),
            pl.BlockSpec((1, F), const),
            pl.BlockSpec((KF, F), const),                        # w2 stacked
            pl.BlockSpec((1, F), const), pl.BlockSpec((1, F), const),
            pl.BlockSpec((1, F), const),
            pl.BlockSpec((1, F), const),                         # wl row
            pl.BlockSpec((1, 1), const),                         # bl
        ],
        out_specs=(pl.BlockSpec((bb, L), lambda i: (i, 0)),
                   pl.BlockSpec((bb, L), lambda i: (i, 0))),
        compiler_params=pltpu.CompilerParams(dimension_semantics=("parallel",)),
    )(alpha_arr, x2, prep["w1s"], prep["b1"], prep["g1"], prep["be1"],
      prep["w2s"], prep["b2"], prep["g2"], prep["be2"], prep["wl"], prep["bl"])
    return dur, duri


# ----------------------------------------------------------------------------
# Kernel 2: LR  (alignment rebuild per mel tile + alignment @ x)
# ----------------------------------------------------------------------------
def _lr_kernel(start_ref, end_ref, x_ref, out_ref):
    mt = out_ref.shape[1]
    L = x_ref.shape[1]
    base = pl.program_id(1) * mt
    frames = base + jax.lax.broadcasted_iota(jnp.int32, (mt, L), 0)   # (Mt, L)
    start = start_ref[...]                        # (1, L) int32 (exclusive)
    end = end_ref[...]                            # (1, L) int32 (inclusive cumsum)
    align = ((frames >= start) & (frames < end)).astype(jnp.float32)  # (Mt, L)
    # TODO(synk): cast align (and x) to bf16 on v6e/v7x if the model tolerates
    # bf16 output precision; align itself is exactly 0/1 so lossless.
    out_ref[0] = jnp.dot(align, x_ref[0],
                         preferred_element_type=jnp.float32).astype(out_ref.dtype)


def lr_expand(x, durations, mel_max_length, tile_m=256):
    """x: (B, L, D); durations: (B, L) int -> (B, mel_max_length, D) f32."""
    B, L, D = x.shape
    M = int(mel_max_length)
    dur = durations.astype(jnp.int32)
    end = jnp.cumsum(dur, axis=-1)                # exact int cumsum (wrapper)
    start = end - dur

    # mel-axis tile: multiple of 8 sublanes; per step VMEM is roughly
    # (Mt*L + Mt*D + L*D)*4 B double-buffered -> tiny at 256, safe for the
    # 64 MiB VMEM of v7x as well as v5e/v6e.
    mt = min(_round_up(tile_m, 8), _round_up(M, 8))
    m_pad = _round_up(M, mt)

    out = pl.pallas_call(
        _lr_kernel,
        out_shape=jax.ShapeDtypeStruct((B, m_pad, D), jnp.float32),
        grid=(B, m_pad // mt),
        in_specs=[
            pl.BlockSpec((1, L), lambda b, m: (b, 0)),
            pl.BlockSpec((1, L), lambda b, m: (b, 0)),
            pl.BlockSpec((1, L, D), lambda b, m: (b, 0, 0)),
        ],
        out_specs=pl.BlockSpec((1, mt, D), lambda b, m: (b, m, 0)),
        compiler_params=pltpu.CompilerParams(
            dimension_semantics=("parallel", "parallel")),
    )(start, end, x)
    return out[:, :M, :]


# ----------------------------------------------------------------------------
# LengthRegulator.forward glue
# ----------------------------------------------------------------------------
def length_regulator_forward(x, prep, alpha=1.0, target=None,
                             mel_max_length=None, max_expand_len=None):
    dur_pred, dur_int = variance_predictor(x, prep, alpha=alpha)
    if target is not None:
        # training branch: expand with ground-truth durations, pad to mel_max_length
        out = lr_expand(x, target, mel_max_length)
        return out, dur_pred
    # inference branch: rounded durations already produced inside the VP kernel.
    # TODO(synk): true expand_max_len is data-dependent (dynamic output shape);
    # a static cap `max_expand_len` is used and the tail is zero-padded.
    out = lr_expand(x, dur_int, max_expand_len)
    # TODO(synk): mel_pos is 1..cap; positions past each item's true expanded
    # length are not masked (static-cap convention).
    mel_pos = jnp.arange(1, out.shape[1] + 1, dtype=jnp.int32)[None, :]
    return out, mel_pos


# ----------------------------------------------------------------------------
# Pure JAX / numpy references (for correctness check only)
# ----------------------------------------------------------------------------
def _ref_variance_predictor(x, p):
    def conv(h, w, b):
        K = w.shape[2]; pad = (K - 1) // 2; L = h.shape[0]
        hp = jnp.pad(h, ((pad, pad), (0, 0)))
        out = b
        for k in range(K):
            out = out + hp[k:k + L] @ w[:, :, k].T
        return out

    def ln(h, g, b):
        mu = h.mean(-1, keepdims=True)
        var = ((h - mu) ** 2).mean(-1, keepdims=True)
        return (h - mu) / jnp.sqrt(var + 1e-5) * g + b

    def one(h):
        h = jnp.maximum(ln(conv(h, p["w1"], p["b1"]), p["g1"], p["be1"]), 0.0)
        h = jnp.maximum(ln(conv(h, p["w2"], p["b2"]), p["g2"], p["be2"]), 0.0)
        return jnp.maximum(h @ p["wl"].T + p["bl"], 0.0)[:, 0]

    return jax.vmap(one)(x)


def _ref_lr(x, dur, M):
    x = np.asarray(x); dur = np.asarray(dur)
    B, L = dur.shape
    expand_max = int(dur.sum(-1).max())
    align = np.zeros((B, expand_max, L), np.float32)
    for i in range(B):                            # literal create_alignment
        count = 0
        for j in range(L):
            for k in range(dur[i, j]):
                align[i, count + k, j] = 1.0
            count += dur[i, j]
    out = align @ x
    if expand_max >= M:                           # static-cap truncation
        return out[:, :M]
    return np.pad(out, ((0, 0), (0, M - expand_max), (0, 0)))


# ----------------------------------------------------------------------------
if __name__ == "__main__":
    B, L, D = 2, 8, 32          # batch, phoneme sequence length, encoder_dim
    F, K = 32, 3                # duration_predictor_filter_size / kernel_size
    MEL_MAX = 40                # static mel_max_length cap

    key = jax.random.PRNGKey(0)
    keys = jax.random.split(key, 10)

    params = {
        "w1": 0.1 * jax.random.normal(keys[0], (F, D, K), jnp.float32),
        "b1": 0.01 * jax.random.normal(keys[1], (F,), jnp.float32),
        "g1": jnp.ones((F,), jnp.float32),
        "be1": jnp.zeros((F,), jnp.float32),
        "w2": 0.1 * jax.random.normal(keys[2], (F, F, K), jnp.float32),
        "b2": 0.01 * jax.random.normal(keys[3], (F,), jnp.float32),
        "g2": jnp.ones((F,), jnp.float32),
        "be2": jnp.zeros((F,), jnp.float32),
        "wl": 0.1 * jax.random.normal(keys[4], (1, F), jnp.float32),
        "bl": 0.01 * jax.random.normal(keys[5], (1,), jnp.float32),
    }
    prep = prepare_vp_params(params)              # one-time weight re-layout

    x = jax.random.normal(keys[6], (B, L, D), jnp.float32)
    target = jax.random.randint(keys[7], (B, L), 1, 5).astype(jnp.int32)

    # --- training branch (target provided) ---
    out, dur_pred = length_regulator_forward(
        x, prep, target=target, mel_max_length=MEL_MAX)
    out, dur_pred = jax.block_until_ready((out, dur_pred))

    ref_dur = _ref_variance_predictor(x, params)
    np.testing.assert_allclose(np.asarray(dur_pred), np.asarray(ref_dur),
                               rtol=1e-4, atol=1e-4)
    ref_out = _ref_lr(x, target, MEL_MAX)
    np.testing.assert_allclose(np.asarray(out), ref_out, rtol=1e-4, atol=1e-4)

    # --- inference branch (target=None) ---
    out_inf, mel_pos = length_regulator_forward(
        x, prep, alpha=1.0, max_expand_len=MEL_MAX)
    out_inf, mel_pos = jax.block_until_ready((out_inf, mel_pos))
    _, dur_int = variance_predictor(x, prep, alpha=1.0)
    ref_inf = _ref_lr(x, np.asarray(jax.device_get(dur_int)), MEL_MAX)
    np.testing.assert_allclose(np.asarray(out_inf), ref_inf,
                               rtol=1e-4, atol=1e-4)

    print("KERNEL_OK")
</pallas_src>

<mosaic_0001>
module attributes {stable_mosaic.version = 11 : i64} {
  func.func @_vp_kernel(%arg0: i32, %arg1: memref<1xf32, #tpu.memory_space<smem>>, %arg2: memref<16x32xf32, #tpu.memory_space<vmem>>, %arg3: memref<96x32xf32, #tpu.memory_space<vmem>>, %arg4: memref<1x32xf32, #tpu.memory_space<vmem>>, %arg5: memref<1x32xf32, #tpu.memory_space<vmem>>, %arg6: memref<1x32xf32, #tpu.memory_space<vmem>>, %arg7: memref<96x32xf32, #tpu.memory_space<vmem>>, %arg8: memref<1x32xf32, #tpu.memory_space<vmem>>, %arg9: memref<1x32xf32, #tpu.memory_space<vmem>>, %arg10: memref<1x32xf32, #tpu.memory_space<vmem>>, %arg11: memref<1x32xf32, #tpu.memory_space<vmem>>, %arg12: memref<1x1xf32, #tpu.memory_space<vmem>>, %arg13: memref<2x8xf32, #tpu.memory_space<vmem>>, %arg14: memref<2x8xi32, #tpu.memory_space<vmem>>) attributes {dimension_semantics = [#tpu.dimension_semantics<parallel>], iteration_bounds = array<i64: 1>, scalar_prefetch = 0 : i64, scratch_operands = 0 : i64, tpu.core_type = #tpu.core_type<tc>, window_params = [{transform_indices = @transform_0, window_bounds = array<i64: 1>}, {transform_indices = @transform_1, window_bounds = array<i64: 16, 32>}, {pipeline_mode = #tpu.pipeline_mode<synchronous>, transform_indices = @transform_2, window_bounds = array<i64: 96, 32>}, {pipeline_mode = #tpu.pipeline_mode<synchronous>, transform_indices = @transform_3, window_bounds = array<i64: 1, 32>}, {pipeline_mode = #tpu.pipeline_mode<synchronous>, transform_indices = @transform_4, window_bounds = array<i64: 1, 32>}, {pipeline_mode = #tpu.pipeline_mode<synchronous>, transform_indices = @transform_5, window_bounds = array<i64: 1, 32>}, {pipeline_mode = #tpu.pipeline_mode<synchronous>, transform_indices = @transform_6, window_bounds = array<i64: 96, 32>}, {pipeline_mode = #tpu.pipeline_mode<synchronous>, transform_indices = @transform_7, window_bounds = array<i64: 1, 32>}, {pipeline_mode = #tpu.pipeline_mode<synchronous>, transform_indices = @transform_8, window_bounds = array<i64: 1, 32>}, {pipeline_mode = #tpu.pipeline_mode<synchronous>, transform_indices = @transform_9, window_bounds = array<i64: 1, 32>}, {pipeline_mode = #tpu.pipeline_mode<synchronous>, transform_indices = @transform_10, window_bounds = array<i64: 1, 32>}, {pipeline_mode = #tpu.pipeline_mode<synchronous>, transform_indices = @transform_11, window_bounds = array<i64: 1, 1>}, {transform_indices = @transform_12, window_bounds = array<i64: 2, 8>}, {transform_indices = @transform_13, window_bounds = array<i64: 2, 8>}]} {
    %c0 = arith.constant 0 : index
    %c0_0 = arith.constant 0 : index
    %0 = vector.load %arg2[%c0, %c0_0] : memref<16x32xf32, #tpu.memory_space<vmem>>, vector<16x32xf32>
    %1 = tpu.iota {dimensions = array<i32: 0>} : vector<16x1xi32>
    %c8_i32 = arith.constant 8 : i32
    %c0_i32 = arith.constant 0 : i32
    %2 = arith.cmpi eq, %c8_i32, %c0_i32 : i32
    %c1_i32 = arith.constant 1 : i32
    %3 = arith.select %2, %c1_i32, %c8_i32 : i32
    %4 = vector.broadcast %3 : i32 to vector<16x1xi32>
    %5 = arith.remsi %1, %4 : vector<16x1xi32>
    %c0_i32_1 = arith.constant 0 : i32
    %6 = vector.broadcast %c0_i32_1 : i32 to vector<16x1xi32>
    %7 = arith.cmpi ne, %5, %6 : vector<16x1xi32>
    %c0_i32_2 = arith.constant 0 : i32
    %8 = vector.broadcast %c0_i32_2 : i32 to vector<16x1xi32>
    %9 = arith.cmpi slt, %5, %8 : vector<16x1xi32>
    %c0_i32_3 = arith.constant 0 : i32
    %10 = arith.cmpi slt, %3, %c0_i32_3 : i32
    %11 = vector.broadcast %10 : i1 to vector<16x1xi1>
    %12 = vector.broadcast %11 : vector<16x1xi1> to vector<16x1xi1>
    %13 = arith.xori %9, %12 : vector<16x1xi1>
    %14 = arith.andi %13, %7 : vector<16x1xi1>
    %15 = vector.broadcast %3 : i32 to vector<16x1xi32>
    %16 = arith.addi %5, %15 : vector<16x1xi32>
    %17 = arith.select %14, %16, %5 : vector<16x1xi1>, vector<16x1xi32>
    %c0_i32_4 = arith.constant 0 : i32
    %18 = vector.broadcast %c0_i32_4 : i32 to vector<16x1xi32>
    %19 = arith.cmpi eq, %17, %18 : vector<16x1xi32>
    %c7_i32 = arith.constant 7 : i32
    %20 = vector.broadcast %c7_i32 : i32 to vector<16x1xi32>
    %21 = arith.cmpi eq, %17, %20 : vector<16x1xi32>
    %c0_5 = arith.constant 0 : index
    %c0_6 = arith.constant 0 : index
    %22 = vector.load %arg4[%c0_5, %c0_6] : memref<1x32xf32, #tpu.memory_space<vmem>>, vector<1x32xf32>
    %c1_i32_7 = arith.constant 1 : i32
    %23 = tpu.dynamic_rotate %0 by %c1_i32_7 dim 0 : vector<16x32xf32>, i32 -> vector<16x32xf32>
    %cst = arith.constant 0.000000e+00 : f32
    %24 = vector.shape_cast %19 : vector<16x1xi1> to vector<16x1xi1>
    %25 = vector.broadcast %24 : vector<16x1xi1> to vector<16x32xi1>
    %26 = vector.broadcast %cst : f32 to vector<16x32xf32>
    %27 = arith.select %25, %26, %23 : vector<16x32xi1>, vector<16x32xf32>
    %c15_i32 = arith.constant 15 : i32
    %28 = tpu.dynamic_rotate %0 by %c15_i32 dim 0 : vector<16x32xf32>, i32 -> vector<16x32xf32>
    %cst_8 = arith.constant 0.000000e+00 : f32
    %29 = vector.shape_cast %21 : vector<16x1xi1> to vector<16x1xi1>
    %30 = vector.broadcast %29 : vector<16x1xi1> to vector<16x32xi1>
    %31 = vector.broadcast %cst_8 : f32 to vector<16x32xf32>
    %32 = arith.select %30, %31, %28 : vector<16x32xi1>, vector<16x32xf32>
    %33 = tpu.concatenate %27, %0, %32 in 1 : vector<16x32xf32>, vector<16x32xf32>, vector<16x32xf32> -> vector<16x96xf32>
    %c0_9 = arith.constant 0 : index
    %c0_10 = arith.constant 0 : index
    %34 = vector.load %arg3[%c0_9, %c0_10] : memref<96x32xf32, #tpu.memory_space<vmem>>, vector<96x32xf32>
    %cst_11 = arith.constant dense<0.000000e+00> : vector<16x32xf32>
    %35 = tpu.matmul %33, %34, %cst_11 {dimension_numbers = #tpu.dot_dimension_numbers<[1], [0], [0], [1], [0, 0, 1, 1], [], []>} : vector<16x96xf32>, vector<96x32xf32>, vector<16x32xf32> -> vector<16x32xf32>
    %36 = vector.broadcast %22 : vector<1x32xf32> to vector<16x32xf32>
    %37 = arith.addf %35, %36 : vector<16x32xf32>
    %c0_12 = arith.constant 0 : index
    %c0_13 = arith.constant 0 : index
    %38 = vector.load %arg5[%c0_12, %c0_13] : memref<1x32xf32, #tpu.memory_space<vmem>>, vector<1x32xf32>
    %c0_14 = arith.constant 0 : index
    %c0_15 = arith.constant 0 : index
    %39 = vector.load %arg6[%c0_14, %c0_15] : memref<1x32xf32, #tpu.memory_space<vmem>>, vector<1x32xf32>
    %cst_16 = arith.constant dense<0.000000e+00> : vector<16xf32>
    %40 = vector.multi_reduction <add>, %37, %cst_16 [1] : vector<16x32xf32> to vector<16xf32>
    %41 = vector.shape_cast %40 : vector<16xf32> to vector<16x1xf32>
    %cst_17 = arith.constant 3.200000e+01 : f32
    %42 = vector.broadcast %cst_17 : f32 to vector<16x1xf32>
    %43 = arith.divf %41, %42 : vector<16x1xf32>
    %44 = vector.broadcast %43 : vector<16x1xf32> to vector<16x32xf32>
    %45 = arith.subf %37, %44 : vector<16x32xf32>
    %46 = arith.mulf %45, %45 : vector<16x32xf32>
    %cst_18 = arith.constant dense<0.000000e+00> : vector<16xf32>
    %47 = vector.multi_reduction <add>, %46, %cst_18 [1] : vector<16x32xf32> to vector<16xf32>
    %48 = vector.shape_cast %47 : vector<16xf32> to vector<16x1xf32>
    %cst_19 = arith.constant 3.200000e+01 : f32
    %49 = vector.broadcast %cst_19 : f32 to vector<16x1xf32>
    %50 = arith.divf %48, %49 : vector<16x1xf32>
    %51 = vector.broadcast %43 : vector<16x1xf32> to vector<16x32xf32>
    %52 = arith.subf %37, %51 : vector<16x32xf32>
    %cst_20 = arith.constant 9.99999974E-6 : f32
    %53 = vector.broadcast %cst_20 : f32 to vector<16x1xf32>
    %54 = arith.addf %50, %53 : vector<16x1xf32>
    %55 = math.rsqrt %54 : vector<16x1xf32>
    %56 = vector.broadcast %55 : vector<16x1xf32> to vector<16x32xf32>
    %57 = arith.mulf %52, %56 : vector<16x32xf32>
    %58 = vector.broadcast %38 : vector<1x32xf32> to vector<16x32xf32>
    %59 = arith.mulf %57, %58 : vector<16x32xf32>
    %60 = vector.broadcast %39 : vector<1x32xf32> to vector<16x32xf32>
    %61 = arith.addf %59, %60 : vector<16x32xf32>
    %cst_21 = arith.constant 0.000000e+00 : f32
    %62 = vector.broadcast %cst_21 : f32 to vector<16x32xf32>
    %63 = arith.maximumf %61, %62 : vector<16x32xf32>
    %c0_22 = arith.constant 0 : index
    %c0_23 = arith.constant 0 : index
    %64 = vector.load %arg8[%c0_22, %c0_23] : memref<1x32xf32, #tpu.memory_space<vmem>>, vector<1x32xf32>
    %c1_i32_24 = arith.constant 1 : i32
    %65 = tpu.dynamic_rotate %63 by %c1_i32_24 dim 0 : vector<16x32xf32>, i32 -> vector<16x32xf32>
    %cst_25 = arith.constant 0.000000e+00 : f32
    %66 = vector.shape_cast %19 : vector<16x1xi1> to vector<16x1xi1>
    %67 = vector.broadcast %66 : vector<16x1xi1> to vector<16x32xi1>
    %68 = vector.broadcast %cst_25 : f32 to vector<16x32xf32>
    %69 = arith.select %67, %68, %65 : vector<16x32xi1>, vector<16x32xf32>
    %c15_i32_26 = arith.constant 15 : i32
    %70 = tpu.dynamic_rotate %63 by %c15_i32_26 dim 0 : vector<16x32xf32>, i32 -> vector<16x32xf32>
    %cst_27 = arith.constant 0.000000e+00 : f32
    %71 = vector.shape_cast %21 : vector<16x1xi1> to vector<16x1xi1>
    %72 = vector.broadcast %71 : vector<16x1xi1> to vector<16x32xi1>
    %73 = vector.broadcast %cst_27 : f32 to vector<16x32xf32>
    %74 = arith.select %72, %73, %70 : vector<16x32xi1>, vector<16x32xf32>
    %75 = tpu.concatenate %69, %63, %74 in 1 : vector<16x32xf32>, vector<16x32xf32>, vector<16x32xf32> -> vector<16x96xf32>
    %c0_28 = arith.constant 0 : index
    %c0_29 = arith.constant 0 : index
    %76 = vector.load %arg7[%c0_28, %c0_29] : memref<96x32xf32, #tpu.memory_space<vmem>>, vector<96x32xf32>
    %cst_30 = arith.constant dense<0.000000e+00> : vector<16x32xf32>
    %77 = tpu.matmul %75, %76, %cst_30 {dimension_numbers = #tpu.dot_dimension_numbers<[1], [0], [0], [1], [0, 0, 1, 1], [], []>} : vector<16x96xf32>, vector<96x32xf32>, vector<16x32xf32> -> vector<16x32xf32>
    %78 = vector.broadcast %64 : vector<1x32xf32> to vector<16x32xf32>
    %79 = arith.addf %77, %78 : vector<16x32xf32>
    %c0_31 = arith.constant 0 : index
    %c0_32 = arith.constant 0 : index
    %80 = vector.load %arg9[%c0_31, %c0_32] : memref<1x32xf32, #tpu.memory_space<vmem>>, vector<1x32xf32>
    %c0_33 = arith.constant 0 : index
    %c0_34 = arith.constant 0 : index
    %81 = vector.load %arg10[%c0_33, %c0_34] : memref<1x32xf32, #tpu.memory_space<vmem>>, vector<1x32xf32>
    %cst_35 = arith.constant dense<0.000000e+00> : vector<16xf32>
    %82 = vector.multi_reduction <add>, %79, %cst_35 [1] : vector<16x32xf32> to vector<16xf32>
    %83 = vector.shape_cast %82 : vector<16xf32> to vector<16x1xf32>
    %cst_36 = arith.constant 3.200000e+01 : f32
    %84 = vector.broadcast %cst_36 : f32 to vector<16x1xf32>
    %85 = arith.divf %83, %84 : vector<16x1xf32>
    %86 = vector.broadcast %85 : vector<16x1xf32> to vector<16x32xf32>
    %87 = arith.subf %79, %86 : vector<16x32xf32>
    %88 = arith.mulf %87, %87 : vector<16x32xf32>
    %cst_37 = arith.constant dense<0.000000e+00> : vector<16xf32>
    %89 = vector.multi_reduction <add>, %88, %cst_37 [1] : vector<16x32xf32> to vector<16xf32>
    %90 = vector.shape_cast %89 : vector<16xf32> to vector<16x1xf32>
    %cst_38 = arith.constant 3.200000e+01 : f32
    %91 = vector.broadcast %cst_38 : f32 to vector<16x1xf32>
    %92 = arith.divf %90, %91 : vector<16x1xf32>
    %93 = vector.broadcast %85 : vector<16x1xf32> to vector<16x32xf32>
    %94 = arith.subf %79, %93 : vector<16x32xf32>
    %cst_39 = arith.constant 9.99999974E-6 : f32
    %95 = vector.broadcast %cst_39 : f32 to vector<16x1xf32>
    %96 = arith.addf %92, %95 : vector<16x1xf32>
    %97 = math.rsqrt %96 : vector<16x1xf32>
    %98 = vector.broadcast %97 : vector<16x1xf32> to vector<16x32xf32>
    %99 = arith.mulf %94, %98 : vector<16x32xf32>
    %100 = vector.broadcast %80 : vector<1x32xf32> to vector<16x32xf32>
    %101 = arith.mulf %99, %100 : vector<16x32xf32>
    %102 = vector.broadcast %81 : vector<1x32xf32> to vector<16x32xf32>
    %103 = arith.addf %101, %102 : vector<16x32xf32>
    %cst_40 = arith.constant 0.000000e+00 : f32
    %104 = vector.broadcast %cst_40 : f32 to vector<16x32xf32>
    %105 = arith.maximumf %103, %104 : vector<16x32xf32>
    %106 = vector.shape_cast %105 : vector<16x32xf32> to vector<2x8x32xf32>
    %c0_41 = arith.constant 0 : index
    %c0_42 = arith.constant 0 : index
    %107 = vector.load %arg11[%c0_41, %c0_42] : memref<1x32xf32, #tpu.memory_space<vmem>>, vector<1x32xf32>
    %108 = vector.shape_cast %107 : vector<1x32xf32> to vector<1x1x32xf32>
    %109 = vector.broadcast %108 : vector<1x1x32xf32> to vector<2x8x32xf32>
    %110 = arith.mulf %106, %109 : vector<2x8x32xf32>
    %cst_43 = arith.constant dense<0.000000e+00> : vector<2x8xf32>
    %111 = vector.multi_reduction <add>, %110, %cst_43 [2] : vector<2x8x32xf32> to vector<2x8xf32>
    %c0_44 = arith.constant 0 : index
    %c0_45 = arith.constant 0 : index
    %112 = vector.load %arg12[%c0_44, %c0_45] : memref<1x1xf32, #tpu.memory_space<vmem>>, vector<1x1xf32>
    %113 = vector.broadcast %112 : vector<1x1xf32> to vector<2x8xf32>
    %114 = arith.addf %111, %113 : vector<2x8xf32>
    %cst_46 = arith.constant 0.000000e+00 : f32
    %115 = vector.broadcast %cst_46 : f32 to vector<2x8xf32>
    %116 = arith.maximumf %114, %115 : vector<2x8xf32>
    %c0_47 = arith.constant 0 : index
    %c0_48 = arith.constant 0 : index
    %117 = vector.load %arg13[%c0_47, %c0_48] : memref<2x8xf32, #tpu.memory_space<vmem>>, vector<2x8xf32>
    tpu.vector_store %arg13[%c0_47, %c0_48], %116 {strides = array<i32>} : memref<2x8xf32, #tpu.memory_space<vmem>>, vector<2x8xf32>,
    %c0_49 = arith.constant 0 : index
    %118 = memref.load %arg1[%c0_49] : memref<1xf32, #tpu.memory_space<smem>>
    %119 = vector.broadcast %118 : f32 to vector<2x8xf32>
    %120 = arith.mulf %116, %119 : vector<2x8xf32>
    %cst_50 = arith.constant 5.000000e-01 : f32
    %121 = vector.broadcast %cst_50 : f32 to vector<2x8xf32>
    %122 = arith.addf %120, %121 : vector<2x8xf32>
    %123 = arith.fptosi %122 : vector<2x8xf32> to vector<2x8xi32>
    %c0_51 = arith.constant 0 : index
    %c0_52 = arith.constant 0 : index
    %124 = vector.load %arg14[%c0_51, %c0_52] : memref<2x8xi32, #tpu.memory_space<vmem>>, vector<2x8xi32>
    tpu.vector_store %arg14[%c0_51, %c0_52], %123 {strides = array<i32>} : memref<2x8xi32, #tpu.memory_space<vmem>>, vector<2x8xi32>,
    return
  }
  func.func @transform_0(%arg0: i32) -> i32 {
    %c0_i32 = arith.constant 0 : i32
    %c0_i32_0 = arith.constant 0 : i32
    return %c0_i32 : i32
  }
  func.func @transform_1(%arg0: i32) -> (i32, i32) {
    %c0_i32 = arith.constant 0 : i32
    %c0_i32_0 = arith.constant 0 : i32
    return %arg0, %c0_i32 : i32, i32
  }
  func.func @transform_2(%arg0: i32) -> (i32, i32) {
    %c0_i32 = arith.constant 0 : i32
    %c0_i32_0 = arith.constant 0 : i32
    %c0_i32_1 = arith.constant 0 : i32
    return %c0_i32, %c0_i32_0 : i32, i32
  }
  func.func @transform_3(%arg0: i32) -> (i32, i32) {
    %c0_i32 = arith.constant 0 : i32
    %c0_i32_0 = arith.constant 0 : i32
    %c0_i32_1 = arith.constant 0 : i32
    return %c0_i32, %c0_i32_0 : i32, i32
  }
  func.func @transform_4(%arg0: i32) -> (i32, i32) {
    %c0_i32 = arith.constant 0 : i32
    %c0_i32_0 = arith.constant 0 : i32
    %c0_i32_1 = arith.constant 0 : i32
    return %c0_i32, %c0_i32_0 : i32, i32
  }
  func.func @transform_5(%arg0: i32) -> (i32, i32) {
    %c0_i32 = arith.constant 0 : i32
    %c0_i32_0 = arith.constant 0 : i32
    %c0_i32_1 = arith.constant 0 : i32
    return %c0_i32, %c0_i32_0 : i32, i32
  }
  func.func @transform_6(%arg0: i32) -> (i32, i32) {
    %c0_i32 = arith.constant 0 : i32
    %c0_i32_0 = arith.constant 0 : i32
    %c0_i32_1 = arith.constant 0 : i32
    return %c0_i32, %c0_i32_0 : i32, i32
  }
  func.func @transform_7(%arg0: i32) -> (i32, i32) {
    %c0_i32 = arith.constant 0 : i32
    %c0_i32_0 = arith.constant 0 : i32
    %c0_i32_1 = arith.constant 0 : i32
    return %c0_i32, %c0_i32_0 : i32, i32
  }
  func.func @transform_8(%arg0: i32) -> (i32, i32) {
    %c0_i32 = arith.constant 0 : i32
    %c0_i32_0 = arith.constant 0 : i32
    %c0_i32_1 = arith.constant 0 : i32
    return %c0_i32, %c0_i32_0 : i32, i32
  }
  func.func @transform_9(%arg0: i32) -> (i32, i32) {
    %c0_i32 = arith.constant 0 : i32
    %c0_i32_0 = arith.constant 0 : i32
    %c0_i32_1 = arith.constant 0 : i32
    return %c0_i32, %c0_i32_0 : i32, i32
  }
  func.func @transform_10(%arg0: i32) -> (i32, i32) {
    %c0_i32 = arith.constant 0 : i32
    %c0_i32_0 = arith.constant 0 : i32
    %c0_i32_1 = arith.constant 0 : i32
    return %c0_i32, %c0_i32_0 : i32, i32
  }
  func.func @transform_11(%arg0: i32) -> (i32, i32) {
    %c0_i32 = arith.constant 0 : i32
    %c0_i32_0 = arith.constant 0 : i32
    %c0_i32_1 = arith.constant 0 : i32
    return %c0_i32, %c0_i32_0 : i32, i32
  }
  func.func @transform_12(%arg0: i32) -> (i32, i32) {
    %c0_i32 = arith.constant 0 : i32
    %c0_i32_0 = arith.constant 0 : i32
    return %arg0, %c0_i32 : i32, i32
  }
  func.func @transform_13(%arg0: i32) -> (i32, i32) {
    %c0_i32 = arith.constant 0 : i32
    %c0_i32_0 = arith.constant 0 : i32
    return %arg0, %c0_i32 : i32, i32
  }
}

</mosaic_0001>

<llo_original>
// kernel: tpu_custom_call.1
$region0: #{tpu_custom_call.1}
  #allocation0 [shape = 'u32[]', space=smem, size = 0x4, offset = 0x4, fixed_abs, tag = 'smem constant byte address 0x4 - core index']
  #allocation1 [shape = 'u32[72,128]{1,0:T(1,128)}', space=vmem, size = 0x9000, scoped, tag = 'internal scratch']
  #allocation2 [shape = 'f32[1]{0:T(128)S(6)}', space=smem, size = 0x200, scoped, tag = 'scoped memory for tpu_custom_call.1']
  #allocation3 [shape = 'f32[1,1]{1,0:T(1,128)S(1)}', space=vmem, size = 0x200, scoped, tag = 'scoped memory for tpu_custom_call.1']
  %s0 = inlined_call_operand.<no memory space> [shape: f32[1], index: 0, kind: input, shape index: {}]
  %s1 = inlined_call_operand.vmem [shape: f32[16,32], index: 1, kind: input, shape index: {}]
  %s2 = inlined_call_operand.vmem [shape: f32[96,32], index: 2, kind: input, shape index: {}]
  %s3 = inlined_call_operand.vmem [shape: f32[1,32], index: 3, kind: input, shape index: {}]
  %s4 = inlined_call_operand.vmem [shape: f32[1,32], index: 4, kind: input, shape index: {}]
  %s5 = inlined_call_operand.vmem [shape: f32[1,32], index: 5, kind: input, shape index: {}]
  %s6 = inlined_call_operand.vmem [shape: f32[96,32], index: 6, kind: input, shape index: {}]
  %s7 = inlined_call_operand.vmem [shape: f32[1,32], index: 7, kind: input, shape index: {}]
  %s8 = inlined_call_operand.vmem [shape: f32[1,32], index: 8, kind: input, shape index: {}]
  %s9 = inlined_call_operand.vmem [shape: f32[1,32], index: 9, kind: input, shape index: {}]
  %s10 = inlined_call_operand.vmem [shape: f32[1,32], index: 10, kind: input, shape index: {}]
  %s11 = inlined_call_operand.<no memory space> [shape: f32[1,1], index: 11, kind: input, shape index: {}]
  %s12 = inlined_call_operand.hbm [shape: f32[2,8], index: 12, kind: output, shape index: {0}]
  %s13 = inlined_call_operand.hbm [shape: s32[2,8], index: 13, kind: output, shape index: {1}]
  %14 = xla_tuple %s12, %s13
  %s15 = sld [smem:[#allocation0]]
  $region66: #{tpu_custom_call.1} parent=0
    _
  %s17 = ssub.s32 1, %s15
  %s18 = scalar_select 0, %s17, %s15
  %19 = sst [smem:[#allocation2]] %s0
  %v20 = vstv %s11
  %21 = vst [vmem:[#allocation3] sm:$0x1] %v20
  $region1: #{tpu_custom_call.1} parent=0
    #allocation4 [shape = 'u8[1024]{0}', space=vmem, size = 0x400, scoped, tag = 'output window, operand 0, single buffered']
    #allocation5 [shape = 's32[1]{0}', space=sflag, size = 0x4, scoped, tag = 'scoped memory for tpu_custom_call.1']
    #allocation6 [shape = 'u8[1024]{0}', space=vmem, size = 0x400, scoped, tag = 'output window, operand 1, single buffered']
    #allocation7 [shape = 's32[1]{0}', space=sflag, size = 0x4, scoped, tag = 'scoped memory for tpu_custom_call.1']
    %22 = vsyncpa [#allocation5], 0
    %23 = vsyncpa [#allocation7], 0
    // Predicated region
    $region2: #{tpu_custom_call.1} parent=1 // pred_check
      _
    $region3: #{tpu_custom_call.1} parent=1 // pred_check_branch
      %25 = sbr.rel (0) target = $region5
    $region4: #{tpu_custom_call.1} parent=1 // pred_region
      _
    $region5: #{tpu_custom_call.1} parent=1 // pred_fallthru
      _
    // Predicated region
    $region6: #{tpu_custom_call.1} parent=1 // pred_check
      _
    $region7: #{tpu_custom_call.1} parent=1 // pred_check_branch
      %27 = sbr.rel (0) target = $region9
    $region8: #{tpu_custom_call.1} parent=1 // pred_region
      _
    $region9: #{tpu_custom_call.1} parent=1 // pred_fallthru
      _
    // Predicated region
    $region10: #{tpu_custom_call.1} parent=1 // pred_check
      _
    $region11: #{tpu_custom_call.1} parent=1 // pred_check_branch
      %29 = sbr.rel (0) target = $region13
    $region12: #{tpu_custom_call.1} parent=1 // pred_region
      _
    $region13: #{tpu_custom_call.1} parent=1 // pred_fallthru
      _
    // Predicated region
    $region14: #{tpu_custom_call.1} parent=1 // pred_check
      _
    $region15: #{tpu_custom_call.1} parent=1 // pred_check_branch
      %31 = sbr.rel (0) target = $region17
    $region16: #{tpu_custom_call.1} parent=1 // pred_region
      _
    $region17: #{tpu_custom_call.1} parent=1 // pred_fallthru
      _
    // Predicated region
    $region18: #{tpu_custom_call.1} parent=1 // pred_check
      _
    $region19: #{tpu_custom_call.1} parent=1 // pred_check_branch
      %33 = sbr.rel (0) target = $region21
    $region20: #{tpu_custom_call.1} parent=1 // pred_region
      _
    $region21: #{tpu_custom_call.1} parent=1 // pred_fallthru
      _
    // Predicated region
    $region22: #{tpu_custom_call.1} parent=1 // pred_check
      _
    $region23: #{tpu_custom_call.1} parent=1 // pred_check_branch
      %35 = sbr.rel (0) target = $region25
    $region24: #{tpu_custom_call.1} parent=1 // pred_region
      _
    $region25: #{tpu_custom_call.1} parent=1 // pred_fallthru
      _
    // Predicated region
    $region26: #{tpu_custom_call.1} parent=1 // pred_check
      _
    $region27: #{tpu_custom_call.1} parent=1 // pred_check_branch
      %37 = sbr.rel (0) target = $region29
    $region28: #{tpu_custom_call.1} parent=1 // pred_region
      _
    $region29: #{tpu_custom_call.1} parent=1 // pred_fallthru
      _
    // Predicated region
    $region30: #{tpu_custom_call.1} parent=1 // pred_check
      _
    $region31: #{tpu_custom_call.1} parent=1 // pred_check_branch
      %39 = sbr.rel (0) target = $region33
    $region32: #{tpu_custom_call.1} parent=1 // pred_region
      _
    $region33: #{tpu_custom_call.1} parent=1 // pred_fallthru
      _
    // Predicated region
    $region34: #{tpu_custom_call.1} parent=1 // pred_check
      _
    $region35: #{tpu_custom_call.1} parent=1 // pred_check_branch
      %41 = sbr.rel (0) target = $region37
    $region36: #{tpu_custom_call.1} parent=1 // pred_region
      _
    $region37: #{tpu_custom_call.1} parent=1 // pred_fallthru
      _
    // Predicated region
    $region38: #{tpu_custom_call.1} parent=1 // pred_check
      _
    $region39: #{tpu_custom_call.1} parent=1 // pred_check_branch
      %43 = sbr.rel (0) target = $region41
    $region40: #{tpu_custom_call.1} parent=1 // pred_region
      _
    $region41: #{tpu_custom_call.1} parent=1 // pred_fallthru
      _
    // Predicated region
    $region42: #{tpu_custom_call.1} parent=1 // pred_check
      _
    $region43: #{tpu_custom_call.1} parent=1 // pred_check_branch
      %45 = sbr.rel (0) target = $region45
    $region44: #{tpu_custom_call.1} parent=1 // pred_region
      _
    $region45: #{tpu_custom_call.1} parent=1 // pred_fallthru
      _
    // Predicated region
    $region46: #{tpu_custom_call.1} parent=1 // pred_check
      _
    $region47: #{tpu_custom_call.1} parent=1 // pred_check_branch
      %47 = sbr.rel (0) target = $region49
    $region48: #{tpu_custom_call.1} parent=1 // pred_region
      _
    $region49: #{tpu_custom_call.1} parent=1 // pred_fallthru
      _
    %v48 = vld [vmem:[%s1] sm:$0xff]
    %v49 = vld [vmem:[%s1 + $0x8] sm:$0xff]
    %v50 = vlaneseq
    %v51 = vshrl.u32 %v50, 7
    %v52 = vadd.s32 %v51, 8
    %vm53 = vcmp.lt.s32.totalorder %v51, 0
    %v54 = vsub.s32 0, %v51
    %v55 = vsel %vm53, %v54, %v51
    %v56 = vshrl.u32 %v55, 3
    %v57 = vand.u32 %v55, 7
    %v58 = vsub.s32 0, %v57
    %v59 = vsel %vm53, %v58, %v57
    %vm60 = vcmp.lt.s32.totalorder %v52, 0
    %v61 = vsub.s32 0, %v52
    %v62 = vsel %vm60, %v61, %v52
    %v63 = vshrl.u32 %v62, 3
    %v64 = vand.u32 %v62, 7
    %v65 = vsub.s32 0, %v64
    %v66 = vsel %vm60, %v65, %v64
    %vm67 = vcmp.ne.s32.totalorder %v59, 0
    %vm68 = vcmp.ne.s32.totalorder %v66, 0
    %vm69 = vcmp.lt.s32.totalorder %v59, 0
    %vm70 = vcmp.lt.s32.totalorder %v66, 0
    %vm71 = vmand %vm69, %vm67
    %vm72 = vmand %vm70, %vm68
    %v73 = vadd.s32 %v59, 8
    %v74 = vadd.s32 %v66, 8
    %v75 = vsel %vm71, %v73, %v59
    %v76 = vsel %vm72, %v74, %v66
    %vm77 = vcmp.eq.s32.totalorder %v75, 0
    %vm78 = vcmp.eq.s32.totalorder %v76, 0
    %vm79 = vcmp.eq.s32.totalorder %v75, 7
    %vm80 = vcmp.eq.s32.totalorder %v76, 7
    %v81 = vld [vmem:[%s3] sm:$0x1]
    %v82 = vrot.slane %v48, 7
    %v83 = vrot.slane %v49, 7
    %vm84 = vcmp.lt.s32.totalorder %v51, 1
    %v85 = vsel %vm84, %v82, %v83
    %v86 = vsel %vm84, %v83, %v82
    %v87 = vsel %vm77, 1, 0
    %v88 = vsel %vm78, 1, 0
    %vm89 = vcmp.eq.s32.totalorder %v87, 1
    %vm90 = vcmp.eq.s32.totalorder %v88, 1
    %v91 = vsel %vm89, 0.0, %v86
    %v92 = vsel %vm90, 0.0, %v85
    %v93 = vrot.slane %v48, 1
    %v94 = vrot.slane %v49, 1
    %vm95 = vcmp.lt.s32.totalorder %v51, 7
    %v96 = vsel %vm95, %v93, %v94
    %v97 = vsel %vm95, %v94, %v93
    %v98 = vsel %vm79, 1, 0
    %v99 = vsel %vm80, 1, 0
    %vm100 = vcmp.eq.s32.totalorder %v98, 1
    %vm101 = vcmp.eq.s32.totalorder %v99, 1
    %v102 = vsel %vm100, 0.0, %v96
    %v103 = vsel %vm101, 0.0, %v97
    %106 = vrot.lane.b32.xlu0 %v48, 32
    %v107 = vpop.permute.xlu0 %106
    %108 = vrot.lane.b32.xlu0 %v49, 32
    %v109 = vpop.permute.xlu0 %108
    %114 = vrot.lane.b32.xlu0 %v102, 64
    %v115 = vpop.permute.xlu0 %114
    %116 = vrot.lane.b32.xlu0 %v103, 64
    %v117 = vpop.permute.xlu0 %116
    %vm120 = vcmask 261120
    %v121 = vsel %vm120, %v91, %v107
    %v122 = vsel %vm120, %v92, %v109
    %vm123 = vcmask 523264
    %v124 = vsel %vm123, %v121, %v115
    %v125 = vsel %vm123, %v122, %v117
    %v126 = vld [vmem:[%s2] sm:$0xff]
    %v127 = vld [vmem:[%s2 + $0x8] sm:$0xff]
    %v128 = vld [vmem:[%s2 + $0x10] sm:$0xff]
    %v129 = vld [vmem:[%s2 + $0x18] sm:$0xff]
    %v130 = vld [vmem:[%s2 + $0x20] sm:$0xff]
    %v131 = vld [vmem:[%s2 + $0x28] sm:$0xff]
    %v132 = vld [vmem:[%s2 + $0x30] sm:$0xff]
    %v133 = vld [vmem:[%s2 + $0x38] sm:$0xff]
    %v134 = vld [vmem:[%s2 + $0x40] sm:$0xff]
    %v135 = vld [vmem:[%s2 + $0x48] sm:$0xff]
    %v136 = vld [vmem:[%s2 + $0x50] sm:$0xff]
    %v137 = vld [vmem:[%s2 + $0x58] sm:$0xff]
    %v139 = vperm.slane %v81, 0
    %vm141 = vcmask 785408
    %v143 = vsel %vm141, %v124, 0
    %v146 = vsel %vm141, %v125, 0
    %148 = vmatpush.msra.mxu0 0.0
    %149 = vmatpush.msra.mxu0 0.0
    %150 = vmatpush.msra.mxu0 0.0
    %151 = vmatpush.msra.mxu0 0.0
    %152 = vmatpush.msra.mxu0 %v137
    %153 = vmatpush.msra.mxu0 %v136
    %154 = vmatpush.msra.mxu0 %v135
    %155 = vmatpush.msra.mxu0 %v134
    %156 = vmatpush.msra.mxu0 %v133
    %157 = vmatpush.msra.mxu0 %v132
    %158 = vmatpush.msra.mxu0 %v131
    %159 = vmatpush.msra.mxu0 %v130
    %160 = vmatpush.msra.mxu0 %v129
    %161 = vmatpush.msra.mxu0 %v128
    %162 = vmatpush.msra.mxu0 %v127
    %163 = vmatpush.msra.mxu0 %v126
    %164 = vmatmul.f32.gmra.mxu0 %v143
    %v165 = vpop.f32.mrf.mxu0
    %v166 = vadd.f32 %v139, %v165
    %167 = vmatmul.f32.gmra.mxu0 %v146
    %v168 = vpop.f32.mrf.mxu0
    %v169 = vadd.f32 %v139, %v168
    %170 = vdwg.mxu0
    %v171 = vld [vmem:[%s4] sm:$0x1]
    %v172 = vld [vmem:[%s5] sm:$0x1]
    %v173 = vsel %vm120, %v166, 0.0
    %174 = vadd.xlane.f32.xlu0 %v173
    %v175 = vpop.xlane.xlu0 %174
    %v176 = vsel %vm120, %v169, 0.0
    %177 = vadd.xlane.f32.xlu0 %v176
    %v178 = vpop.xlane.xlu0 %177
    %v179 = vrcp.pop 32.0
    %v180 = vmul.f32 32.0, %v179
    %v181 = vsub.f32 1.0, %v180
    %v182 = vmul.f32 %v179, %v181
    %v183 = vadd.f32 %v179, %v182
    %vm184 = vweird.f32 %v179
    %v185 = vsel %vm184, %v179, %v183
    %v186 = vmul.f32 %v175, %v185
    %v187 = vmul.f32 %v178, %v185
    %v188 = vsub.f32 %v166, %v186
    %v189 = vsub.f32 %v169, %v187
    %v190 = vmul.f32 %v188, %v188
    %v191 = vmul.f32 %v189, %v189
    %v192 = vsel %vm120, %v190, 0.0
    %193 = vadd.xlane.f32.xlu0 %v192
    %v194 = vpop.xlane.xlu0 %193
    %v195 = vsel %vm120, %v191, 0.0
    %196 = vadd.xlane.f32.xlu0 %v195
    %v197 = vpop.xlane.xlu0 %196
    %v198 = vmul.f32 %v194, %v185
    %v199 = vmul.f32 %v197, %v185
    %v200 = vadd.f32 %v198, 1e-05
    %v201 = vadd.f32 %v199, 1e-05
    %v202 = vrsqrt.pop %v200
    %v203 = vmul.f32 %v202, %v200
    %v204 = vmul.f32 %v203, %v202
    %v205 = vmul.f32 0.5, %v204
    %v206 = vsub.f32 1.5, %v205
    %v207 = vmul.f32 %v202, %v206
    %vm208 = vweird.f32 %v200
    %vm209 = vweird.f32 %v202
    %vm210 = vmor %vm208, %vm209
    %v211 = vsel %vm210, %v202, %v207
    %v212 = vrsqrt.pop %v201
    %v213 = vmul.f32 %v212, %v201
    %v214 = vmul.f32 %v213, %v212
    %v215 = vmul.f32 0.5, %v214
    %v216 = vsub.f32 1.5, %v215
    %v217 = vmul.f32 %v212, %v216
    %vm218 = vweird.f32 %v201
    %vm219 = vweird.f32 %v212
    %vm220 = vmor %vm218, %vm219
    %v221 = vsel %vm220, %v212, %v217
    %v222 = vmul.f32 %v188, %v211
    %v223 = vmul.f32 %v189, %v221
    %v225 = vperm.slane %v171, 0
    %v227 = vmul.f32 %v222, %v225
    %v228 = vmul.f32 %v223, %v225
    %v230 = vperm.slane %v172, 0
    %v232 = vadd.f32 %v227, %v230
    %v233 = vadd.f32 %v228, %v230
    %v234 = vmax.f32 %v232, 0.0
    %v235 = vmax.f32 %v233, 0.0
    %v236 = vld [vmem:[%s7] sm:$0x1]
    %v237 = vrot.slane %v234, 7
    %v238 = vrot.slane %v235, 7
    %v239 = vsel %vm84, %v237, %v238
    %v240 = vsel %vm84, %v238, %v237
    %v241 = vsel %vm89, 0.0, %v240
    %v242 = vsel %vm90, 0.0, %v239
    %v243 = vrot.slane %v234, 1
    %v244 = vrot.slane %v235, 1
    %v245 = vsel %vm95, %v243, %v244
    %v246 = vsel %vm95, %v244, %v243
    %v247 = vsel %vm100, 0.0, %v245
    %v248 = vsel %vm101, 0.0, %v246
    %251 = vrot.lane.b32.xlu0 %v234, 32
    %v252 = vpop.permute.xlu0 %251
    %253 = vrot.lane.b32.xlu0 %v235, 32
    %v254 = vpop.permute.xlu0 %253
    %259 = vrot.lane.b32.xlu0 %v247, 64
    %v260 = vpop.permute.xlu0 %259
    %261 = vrot.lane.b32.xlu0 %v248, 64
    %v262 = vpop.permute.xlu0 %261
    %v265 = vsel %vm120, %v241, %v252
    %v266 = vsel %vm120, %v242, %v254
    %v267 = vsel %vm123, %v265, %v260
    %v268 = vsel %vm123, %v266, %v262
    %v269 = vld [vmem:[%s6] sm:$0xff]
    %v270 = vld [vmem:[%s6 + $0x8] sm:$0xff]
    %v271 = vld [vmem:[%s6 + $0x10] sm:$0xff]
    %v272 = vld [vmem:[%s6 + $0x18] sm:$0xff]
    %v273 = vld [vmem:[%s6 + $0x20] sm:$0xff]
    %v274 = vld [vmem:[%s6 + $0x28] sm:$0xff]
    %v275 = vld [vmem:[%s6 + $0x30] sm:$0xff]
    %v276 = vld [vmem:[%s6 + $0x38] sm:$0xff]
    %v277 = vld [vmem:[%s6 + $0x40] sm:$0xff]
    %v278 = vld [vmem:[%s6 + $0x48] sm:$0xff]
    %v279 = vld [vmem:[%s6 + $0x50] sm:$0xff]
    %v280 = vld [vmem:[%s6 + $0x58] sm:$0xff]
    %v282 = vperm.slane %v236, 0
    %v285 = vsel %vm141, %v267, 0
    %v288 = vsel %vm141, %v268, 0
    %290 = vmatpush.msra.mxu0 0.0
    %291 = vmatpush.msra.mxu0 0.0
    %292 = vmatpush.msra.mxu0 0.0
    %293 = vmatpush.msra.mxu0 0.0
    %294 = vmatpush.msra.mxu0 %v280
    %295 = vmatpush.msra.mxu0 %v279
    %296 = vmatpush.msra.mxu0 %v278
    %297 = vmatpush.msra.mxu0 %v277
    %298 = vmatpush.msra.mxu0 %v276
    %299 = vmatpush.msra.mxu0 %v275
    %300 = vmatpush.msra.mxu0 %v274
    %301 = vmatpush.msra.mxu0 %v273
    %302 = vmatpush.msra.mxu0 %v272
    %303 = vmatpush.msra.mxu0 %v271
    %304 = vmatpush.msra.mxu0 %v270
    %305 = vmatpush.msra.mxu0 %v269
    %306 = vmatmul.f32.gmra.mxu0 %v285
    %v307 = vpop.f32.mrf.mxu0
    %v308 = vadd.f32 %v282, %v307
    %309 = vmatmul.f32.gmra.mxu0 %v288
    %v310 = vpop.f32.mrf.mxu0
    %v311 = vadd.f32 %v282, %v310
    %312 = vdwg.mxu0
    %v313 = vld [vmem:[%s8] sm:$0x1]
    %v314 = vld [vmem:[%s9] sm:$0x1]
    %v315 = vsel %vm120, %v308, 0.0
    %316 = vadd.xlane.f32.xlu0 %v315
    %v317 = vpop.xlane.xlu0 %316
    %v318 = vsel %vm120, %v311, 0.0
    %319 = vadd.xlane.f32.xlu0 %v318
    %v320 = vpop.xlane.xlu0 %319
    %v321 = vmul.f32 %v317, %v185
    %v322 = vmul.f32 %v320, %v185
    %v323 = vsub.f32 %v308, %v321
    %v324 = vsub.f32 %v311, %v322
    %v325 = vmul.f32 %v323, %v323
    %v326 = vmul.f32 %v324, %v324
    %v327 = vsel %vm120, %v325, 0.0
    %328 = vadd.xlane.f32.xlu0 %v327
    %v329 = vpop.xlane.xlu0 %328
    %v330 = vsel %vm120, %v326, 0.0
    %331 = vadd.xlane.f32.xlu0 %v330
    %v332 = vpop.xlane.xlu0 %331
    %v333 = vmul.f32 %v329, %v185
    %v334 = vmul.f32 %v332, %v185
    %v335 = vadd.f32 %v333, 1e-05
    %v336 = vadd.f32 %v334, 1e-05
    %v337 = vrsqrt.pop %v335
    %v338 = vmul.f32 %v337, %v335
    %v339 = vmul.f32 %v338, %v337
    %v340 = vmul.f32 0.5, %v339
    %v341 = vsub.f32 1.5, %v340
    %v342 = vmul.f32 %v337, %v341
    %vm343 = vweird.f32 %v335
    %vm344 = vweird.f32 %v337
    %vm345 = vmor %vm343, %vm344
    %v346 = vsel %vm345, %v337, %v342
    %v347 = vrsqrt.pop %v336
    %v348 = vmul.f32 %v347, %v336
    %v349 = vmul.f32 %v348, %v347
    %v350 = vmul.f32 0.5, %v349
    %v351 = vsub.f32 1.5, %v350
    %v352 = vmul.f32 %v347, %v351
    %vm353 = vweird.f32 %v336
    %vm354 = vweird.f32 %v347
    %vm355 = vmor %vm353, %vm354
    %v356 = vsel %vm355, %v347, %v352
    %v357 = vmul.f32 %v323, %v346
    %v358 = vmul.f32 %v324, %v356
    %v360 = vperm.slane %v313, 0
    %v362 = vmul.f32 %v357, %v360
    %v363 = vmul.f32 %v358, %v360
    %v365 = vperm.slane %v314, 0
    %v367 = vadd.f32 %v362, %v365
    %v368 = vadd.f32 %v363, %v365
    %v369 = vmax.f32 %v367, 0.0
    %v370 = vmax.f32 %v368, 0.0
    %v371 = vld [vmem:[%s10] sm:$0x1]
    %v373 = vperm.slane %v371, 0
    %v375 = vmul.f32 %v369, %v373
    %v376 = vmul.f32 %v370, %v373
    %v377 = vsel %vm120, %v375, 0.0
    %378 = vadd.xlane.f32.xlu0 %v377
    %v379 = vpop.xlane.xlu0 %378
    %v380 = vsel %vm120, %v376, 0.0
    %381 = vadd.xlane.f32.xlu0 %v380
    %v382 = vpop.xlane.xlu0 %381
    %v383 = vld [vmem:[#allocation3] sm:$0x1]
    %v385 = vperm.slane %v383, 0
    %386 = vset.pattern.permute.xlu0 0
    %387 = vperm.xlu0 %386, %v385
    %v388 = vpop.permute.xlu0 %387
    %v390 = vadd.f32 %v379, %v388
    %v391 = vadd.f32 %v382, %v388
    %v392 = vmax.f32 %v390, 0.0
    %v393 = vmax.f32 %v391, 0.0
    %v396 = vlaneseq
    %v397 = vand.u32 %v396, 127
    %v398 = vperm.slane %v392, %v397
    %v399 = vperm.slane %v393, %v397
    %vm400 = vcmask 1041409
    %v401 = vsel %vm400, %v399, %v398
    %vm403 = vcmask 58368
    %404 = vst.msk [vmem:[#allocation4] sm:$0x3] %vm403, %v401
    %s405 = sld [smem:[#allocation2]]
    %v406 = vstv %s405
    %v407 = vmul.f32 %v392, %v406
    %v408 = vmul.f32 %v393, %v406
    %v409 = vadd.f32 %v407, 0.5
    %v410 = vadd.f32 %v408, 0.5
    %v411 = vcvt.f32.s32.to.zero.pseudo %v409
    %v412 = vcvt.f32.s32.to.zero.pseudo %v410
    %v413 = vperm.slane %v411, %v397
    %v414 = vperm.slane %v412, %v397
    %v415 = vsel %vm400, %v414, %v413
    %416 = vst.msk [vmem:[#allocation6] sm:$0x3] %vm403, %v415
    // Predicated region
    $region50: #{tpu_custom_call.1} parent=1 // pred_check
      _
    $region51: #{tpu_custom_call.1} parent=1 // pred_check_branch
      %418 = sbr.rel (0) target = $region53
    $region52: #{tpu_custom_call.1} parent=1 // pred_region
      %420 = vsyncadd [#allocation5], 0
      %s422 = sshll.u32 [#allocation4], 4
      %s423 = int_to_ptr.vmem [resolvable:$true] %s422
      %s424 = sshll.u32 %s12, 4
      %s425 = int_to_ptr.hbm [resolvable:$true] %s424
      %427 = dma.vmem_to_hbm [thread:$0]  %s423, 32, %s425, [#allocation5]
    $region53: #{tpu_custom_call.1} parent=1 // pred_fallthru
      _
    // Predicated region
    $region54: #{tpu_custom_call.1} parent=1 // pred_check
      _
    $region55: #{tpu_custom_call.1} parent=1 // pred_check_branch
      %429 = sbr.rel (0) target = $region57
    $region56: #{tpu_custom_call.1} parent=1 // pred_region
      %431 = vsyncadd [#allocation7], 0
      %s433 = sshll.u32 [#allocation6], 4
      %s434 = int_to_ptr.vmem [resolvable:$true] %s433
      %s435 = sshll.u32 %s13, 4
      %s436 = int_to_ptr.hbm [resolvable:$true] %s435
      %438 = dma.vmem_to_hbm [thread:$0]  %s434, 32, %s436, [#allocation7]
    $region57: #{tpu_custom_call.1} parent=1 // pred_fallthru
      _
    // Predicated region
    $region58: #{tpu_custom_call.1} parent=1 // pred_check
      _
    $region59: #{tpu_custom_call.1} parent=1 // pred_check_branch
      %440 = sbr.rel (0) target = $region61
    $region60: #{tpu_custom_call.1} parent=1 // pred_region
      %442 = dma.done [#allocation5], 32
    $region61: #{tpu_custom_call.1} parent=1 // pred_fallthru
      _
    // Predicated region
    $region62: #{tpu_custom_call.1} parent=1 // pred_check
      _
    $region63: #{tpu_custom_call.1} parent=1 // pred_check_branch
      %444 = sbr.rel (0) target = $region65
    $region64: #{tpu_custom_call.1} parent=1 // pred_region
      %446 = dma.done [#allocation7], 32
    $region65: #{tpu_custom_call.1} parent=1 // pred_fallthru
      _
    %447 = vsyncpa [#allocation5], 1
    %448 = vsyncpa [#allocation7], 1

</llo_original>
